<compile_context>
chip_gen: v7x
topology: tpu7x:2x2x1
jax: 0.10.0
libtpu: 0.0.40
codegen_flags: <defaults>
</compile_context>

<pallas_src>
import jax
import jax.numpy as jnp
from jax.experimental import pallas as pl
from jax.experimental.pallas import tpu as pltpu


# ---------------------------------------------------------------------------
# Module-exact path: single scalar parameter passthrough (SMEM, aliased I/O).
# ---------------------------------------------------------------------------
def _scalar_passthrough_kernel(p_ref, out_ref):
    # p_ref, out_ref: SMEM refs, shape (1,). Pure scalar-slot work.
    out_ref[0] = p_ref[0]


def unconstrained_scalar_forward(param):
    """param: (1,) -> (1,) (identity, matching UnconstrainedScalar.forward).

    NOTE: the production path is to simply return `param` (PyTorch returns the
    parameter by reference). The pallas_call exists only as the kernel
    deliverable; input_output_aliases makes it effectively a no-op copy.
    """
    assert param.shape == (1,)
    return pl.pallas_call(
        _scalar_passthrough_kernel,
        out_shape=jax.ShapeDtypeStruct((1,), param.dtype),
        in_specs=[pl.BlockSpec(memory_space=pltpu.SMEM)],
        out_specs=pl.BlockSpec(memory_space=pltpu.SMEM),
        input_output_aliases={0: 0},
    )(param)


# ---------------------------------------------------------------------------
# Batched variant: forward B independent scalars in one call.
# ---------------------------------------------------------------------------
_LANES = 128
_DEFAULT_BLOCK_ROWS = 2048  # (2048, 128) f32 = 1 MiB tile per grid step


def _identity_block_kernel(p_ref, out_ref):
    # One lane-dense VMEM tile: vector loads + unmasked lane-dense stores.
    out_ref[...] = p_ref[...]


def unconstrained_scalar_forward_batched(params, *, block_rows=_DEFAULT_BLOCK_ROWS):
    """params: (B,) any float dtype -> (B,) identity, arbitrary B.

    Small B (<= block_rows*128): single full-extent block, no grid.
    Large B: grid over (block_rows, 128) tiles (1 MiB each at f32 defaults),
    batch axis marked "parallel" so v7x's two TensorCores split the copy.
    Input is aliased to the output, so no extra HBM output traffic is needed
    when the caller's buffer can be donated.
    """
    (B,) = params.shape
    dtype = params.dtype
    assert block_rows % 8 == 0, "block rows must respect the (8, 128) tiling"
    block_elems = block_rows * _LANES

    if B <= block_elems:
        # Single full-extent block: pad only up to a lane multiple.
        rows = pl.cdiv(B, _LANES)
        padded = rows * _LANES
        slab = params if padded == B else jnp.pad(params, (0, padded - B))
        slab2d = slab.reshape(rows, _LANES)
        out2d = pl.pallas_call(
            _identity_block_kernel,
            out_shape=jax.ShapeDtypeStruct(slab2d.shape, dtype),
            input_output_aliases={0: 0},
        )(slab2d)
    else:
        # Gridded path over 1 MiB tiles (default block_rows).
        n_tiles = pl.cdiv(B, block_elems)
        padded = n_tiles * block_elems
        slab = params if padded == B else jnp.pad(params, (0, padded - B))
        slab2d = slab.reshape(n_tiles * block_rows, _LANES)
        out2d = pl.pallas_call(
            _identity_block_kernel,
            out_shape=jax.ShapeDtypeStruct(slab2d.shape, dtype),
            grid=(n_tiles,),
            in_specs=[pl.BlockSpec((block_rows, _LANES), lambda i: (i, 0))],
            out_specs=pl.BlockSpec((block_rows, _LANES), lambda i: (i, 0)),
            input_output_aliases={0: 0},
            compiler_params=pltpu.CompilerParams(
                dimension_semantics=("parallel",)  # v7x: 2 TCs split the batch
            ),
        )(slab2d)

    return out2d.reshape(padded)[:B]


if __name__ == "__main__":
    key = jax.random.PRNGKey(0)

    # Deterministic parameter init matching torch.rand(1): uniform [0, 1).
    param = jax.random.uniform(key, (1,), dtype=jnp.float32)

    # --- module-exact forward ---
    out = jax.block_until_ready(unconstrained_scalar_forward(param))
    assert out.shape == (1,) and out.dtype == param.dtype
    assert jnp.array_equal(out, param), (out, param)

    # --- batched forward: lane-multiple B (single full-extent block path) ---
    p1 = jax.random.uniform(jax.random.fold_in(key, 1), (2048,), dtype=jnp.float32)
    o1 = jax.block_until_ready(unconstrained_scalar_forward_batched(p1))
    assert o1.shape == p1.shape and o1.dtype == p1.dtype
    assert jnp.array_equal(o1, p1)

    # --- batched forward: ragged B (padding + slice, still one block) ---
    p2 = jax.random.uniform(jax.random.fold_in(key, 2), (777,), dtype=jnp.float32)
    o2 = jax.block_until_ready(unconstrained_scalar_forward_batched(p2))
    assert o2.shape == p2.shape and jnp.array_equal(o2, p2)

    # --- batched forward: gridded path, small block_rows override purely to
    #     exercise the grid codegen at a small test shape (production default
    #     stays at 2048 rows = 1 MiB tiles) ---
    p3 = jax.random.uniform(
        jax.random.fold_in(key, 3), (3 * 64 * _LANES + 5,), dtype=jnp.float32
    )
    o3 = jax.block_until_ready(
        unconstrained_scalar_forward_batched(p3, block_rows=64)
    )
    assert o3.shape == p3.shape and jnp.array_equal(o3, p3)

    print("KERNEL_OK")
</pallas_src>

<mosaic_0001>
module attributes {stable_mosaic.version = 11 : i64} {
  func.func @_scalar_passthrough_kernel(%arg0: memref<1xf32, #tpu.memory_space<smem>>, %arg1: memref<1xf32, #tpu.memory_space<smem>>) attributes {dimension_semantics = [], scalar_prefetch = 0 : i64, scratch_operands = 0 : i64, tpu.core_type = #tpu.core_type<tc>} {
    %c0 = arith.constant 0 : index
    %0 = memref.load %arg0[%c0] : memref<1xf32, #tpu.memory_space<smem>>
    %c0_0 = arith.constant 0 : index
    %1 = memref.load %arg1[%c0_0] : memref<1xf32, #tpu.memory_space<smem>>
    memref.store %0, %arg1[%c0_0] : memref<1xf32, #tpu.memory_space<smem>>
    return
  }
}

</mosaic_0001>

<llo_original>
// kernel: tpu_custom_call.1
$region0: #{tpu_custom_call.1}
  #allocation0 [shape = 'u32[]', space=smem, size = 0x4, offset = 0x4, fixed_abs, tag = 'smem constant byte address 0x4 - core index']
  #allocation1 [shape = 'u32[144,128]{1,0:T(1,128)}', space=vmem, size = 0x12000, scoped, tag = 'internal scratch']
  #allocation2 [shape = 'f32[1]{0:T(128)S(6)}', space=smem, size = 0x200, scoped, tag = 'scoped memory for tpu_custom_call.1']
  %s0 = inlined_call_operand.<no memory space> [shape: f32[1], index: 0, kind: input, shape index: {}, may-alias: {0,1}]
  %s1 = inlined_call_operand.hbm [shape: f32[1], index: 1, kind: output, shape index: {}, may-alias: {0,1}]
  %s2 = sld [smem:[#allocation0]]
  $region14: #{tpu_custom_call.1} parent=0
    _
  %s4 = ssub.s32 1, %s2
  %s5 = scalar_select 0, %s4, %s2
  %6 = sst [smem:[#allocation2]] %s0
  $region1: #{tpu_custom_call.1} parent=0
    #allocation3 [shape = 'u8[512]{0}', space=smem, size = 0x200, scoped, tag = 'output window, operand 0, single buffered']
    #allocation4 [shape = 's32[1]{0}', space=sflag, size = 0x4, scoped, tag = 'scoped memory for tpu_custom_call.1']
    %7 = vsyncpa [#allocation4], 0
    // Predicated region
    $region2: #{tpu_custom_call.1} parent=1 // pred_check
      _
    $region3: #{tpu_custom_call.1} parent=1 // pred_check_branch
      %9 = sbr.rel (0) target = $region5
    $region4: #{tpu_custom_call.1} parent=1 // pred_region
      _
    $region5: #{tpu_custom_call.1} parent=1 // pred_fallthru
      _
    %s10 = sld [smem:[#allocation2]]
    %s11 = scalar_lea.smem [#allocation3], 0
    %12 = sst [smem:[%s11]] %s10
    // Predicated region
    $region6: #{tpu_custom_call.1} parent=1 // pred_check
      _
    $region7: #{tpu_custom_call.1} parent=1 // pred_check_branch
      %14 = sbr.rel (0) target = $region9
    $region8: #{tpu_custom_call.1} parent=1 // pred_region
      %s16 = ssub.s32 16, 16
      %17 = vsyncadd [#allocation4], %s16
      %20 = dma.smem_to_hbm [#allocation3], 16, %s1, [#allocation4]
    $region9: #{tpu_custom_call.1} parent=1 // pred_fallthru
      _
    // Predicated region
    $region10: #{tpu_custom_call.1} parent=1 // pred_check
      _
    $region11: #{tpu_custom_call.1} parent=1 // pred_check_branch
      %22 = sbr.rel (0) target = $region13
    $region12: #{tpu_custom_call.1} parent=1 // pred_region
      %23 = dma.done [#allocation4], 16
    $region13: #{tpu_custom_call.1} parent=1 // pred_fallthru
      _
    %24 = sfence
    %25 = vsyncpa [#allocation4], 1

</llo_original>
